<compile_context>
chip_gen: v5e
topology: v5e:2x2
jax: 0.10.0
libtpu: 0.0.40
codegen_flags: <defaults>
</compile_context>

<pallas_src>
import functools
import math

import jax
import jax.numpy as jnp
from jax.experimental import pallas as pl
from jax.experimental.pallas import tpu as pltpu


def _round_up(n, m):
    return ((n + m - 1) // m) * m


# ----------------------------------------------------------------------------- kernels
def _gate(y, w1_ref, w2_ref):
    """sigmoid(relu(y @ w1) @ w2), computed in f32.  y: (rows, C)."""
    h = jnp.maximum(
        jnp.dot(y, w1_ref[...].astype(jnp.float32),
                preferred_element_type=jnp.float32), 0.0)
    return jax.nn.sigmoid(
        jnp.dot(h, w2_ref[...].astype(jnp.float32),
                preferred_element_type=jnp.float32))


def se_resident_kernel(x_ref, w1_ref, w2_ref, o_ref, *, inv_len):
    """Single pass: the whole (1, C, L) block is VMEM-resident (1R + 1W of x)."""
    x = x_ref[...]                                              # (1, C, L)
    y = jnp.sum(x.astype(jnp.float32), axis=-1) * inv_len       # (1, C) mean
    s = _gate(y, w1_ref, w2_ref)                                # (1, C) gate
    o_ref[...] = x * s[:, :, None].astype(x.dtype)


def se_pool_fc_kernel(x_ref, w1_ref, w2_ref, s_ref, *, inv_len, true_l, ragged):
    """Accumulate sum_L(x) in the resident (1, C, 1) output block across L
    tiles; at the last tile convert it in place into the SE gate."""
    l = pl.program_id(1)

    @pl.when(l == 0)
    def _():
        s_ref[...] = jnp.zeros_like(s_ref)

    x = x_ref[...].astype(jnp.float32)                          # (1, C, TL)
    if ragged:  # mask out-of-bounds lanes of the partial final tile
        tl = x.shape[-1]
        lane = jax.lax.broadcasted_iota(jnp.int32, x.shape, dimension=2)
        x = jnp.where(l * tl + lane < true_l, x, 0.0)
    s_ref[...] += jnp.sum(x, axis=-1, keepdims=True)            # XLU reduce

    @pl.when(l == pl.num_programs(1) - 1)
    def _():
        y = s_ref[...][:, :, 0] * inv_len                       # (1, C) mean
        s_ref[...] = _gate(y, w1_ref, w2_ref)[:, :, None]       # gate, once


def se_scale_kernel(x_ref, s_ref, o_ref):
    """out = x * s.  Gate is (1, C, 1): cheap lane broadcast, native dtype."""
    o_ref[...] = x_ref[...] * s_ref[...].astype(o_ref.dtype)


# ----------------------------------------------------------------------------- wrapper
def se_block(x, w1, w2, *, block_budget_bytes=20 * 1024 * 1024):
    """Squeeze-and-Excitation: x * sigmoid(relu(mean_L(x) @ w1) @ w2)[:, :, None].

    x : (B, C, L)   PyTorch NCL layout
    w1: (C, H)      == torch Linear(C, C//r).weight.T   (no bias)
    w2: (H, C)      == torch Linear(C//r, C).weight.T   (no bias)
    """
    B, C, L = x.shape
    H = w1.shape[1]
    assert w1.shape == (C, H) and w2.shape == (H, C)

    itemsize = jnp.dtype(x.dtype).itemsize
    inv_len = 1.0 / L
    vmem = dict(vmem_limit_bytes=32 * 1024 * 1024)   # <= v7x scoped ceiling

    # ---- resident path: (x-in + out) blocks, double-buffered, fit the budget
    if 4 * C * _round_up(L, 128) * itemsize <= block_budget_bytes:
        return pl.pallas_call(
            functools.partial(se_resident_kernel, inv_len=inv_len),
            out_shape=jax.ShapeDtypeStruct((B, C, L), x.dtype),
            grid=(B,),
            in_specs=[
                pl.BlockSpec((1, C, L), lambda b: (b, 0, 0)),
                pl.BlockSpec((C, H), lambda b: (0, 0)),
                pl.BlockSpec((H, C), lambda b: (0, 0)),
            ],
            out_specs=pl.BlockSpec((1, C, L), lambda b: (b, 0, 0)),
            compiler_params=pltpu.CompilerParams(
                dimension_semantics=("parallel",), **vmem),
        )(x, w1, w2)

    # ---- streaming path: L tiled, tile length sized from the VMEM budget ---
    # scale pass holds x-in + out blocks, double-buffered: 4 * C * TL * itemsize
    tl_budget = block_budget_bytes // (4 * C * itemsize)
    TL = max(128, min(_round_up(L, 128), (tl_budget // 128) * 128))
    n_l = pl.cdiv(L, TL)
    ragged = (L % TL) != 0

    # Pass 1: pooled mean -> FC1/ReLU -> FC2/sigmoid -> gate (B, C, 1), f32.
    s = pl.pallas_call(
        functools.partial(se_pool_fc_kernel, inv_len=inv_len, true_l=L,
                          ragged=ragged),
        out_shape=jax.ShapeDtypeStruct((B, C, 1), jnp.float32),
        grid=(B, n_l),
        in_specs=[
            pl.BlockSpec((1, C, TL), lambda b, l: (b, 0, l)),
            pl.BlockSpec((C, H), lambda b, l: (0, 0)),
            pl.BlockSpec((H, C), lambda b, l: (0, 0)),
        ],
        out_specs=pl.BlockSpec((1, C, 1), lambda b, l: (b, 0, 0)),
        compiler_params=pltpu.CompilerParams(
            dimension_semantics=("parallel", "arbitrary"), **vmem),
    )(x, w1, w2)

    # Pass 2: out = x * gate, fully parallel (megacore-sharded on v7x).
    # TODO(synk): if a trace shows per-step DMA gaps on v7x, sweep
    # pipeline_mode=pl.Buffered(3) on the (1, C, TL) blocks.
    return pl.pallas_call(
        se_scale_kernel,
        out_shape=jax.ShapeDtypeStruct((B, C, L), x.dtype),
        grid=(B, n_l),
        in_specs=[
            pl.BlockSpec((1, C, TL), lambda b, l: (b, 0, l)),
            pl.BlockSpec((1, C, 1), lambda b, l: (b, 0, 0)),
        ],
        out_specs=pl.BlockSpec((1, C, TL), lambda b, l: (b, 0, l)),
        compiler_params=pltpu.CompilerParams(
            dimension_semantics=("parallel", "parallel"), **vmem),
    )(x, s)


# ----------------------------------------------------------------------------- demo
def _se_ref(x, w1, w2):
    gate = jax.nn.sigmoid(jnp.maximum(jnp.mean(x, axis=-1) @ w1, 0.0) @ w2)
    return x * gate[:, :, None]


if __name__ == "__main__":
    B, C, L, R = 2, 64, 2048, 16                      # SEBlock(channels=64, reduction=16)
    H = C // R

    key = jax.random.PRNGKey(0)
    kx, k1, k2, kx2 = jax.random.split(key, 4)
    x = jax.random.normal(kx, (B, C, L), jnp.float32)
    # PyTorch nn.Linear default init: U(-1/sqrt(fan_in), 1/sqrt(fan_in)); stored transposed.
    b1 = 1.0 / math.sqrt(C)
    w1 = jax.random.uniform(k1, (C, H), jnp.float32, -b1, b1)
    b2 = 1.0 / math.sqrt(H)
    w2 = jax.random.uniform(k2, (H, C), jnp.float32, -b2, b2)

    # 1) default dispatch -> VMEM-resident single-pass path (1R + 1W of x).
    y = jax.block_until_ready(jax.jit(se_block)(x, w1, w2))
    ref = _se_ref(x, w1, w2)
    assert y.shape == (B, C, L), y.shape
    assert bool(jnp.all(jnp.isfinite(y)))
    assert jnp.allclose(y, ref, rtol=1e-4, atol=1e-5), float(jnp.max(jnp.abs(y - ref)))

    # 2) force the streaming two-pass path (small VMEM budget -> TL = 512).
    stream = jax.jit(functools.partial(se_block, block_budget_bytes=512 * 1024))
    y2 = jax.block_until_ready(stream(x, w1, w2))
    assert jnp.allclose(y2, ref, rtol=1e-4, atol=1e-5), float(jnp.max(jnp.abs(y2 - ref)))

    # 3) streaming path with ragged L (in-kernel tail masking, no pad/slice).
    Lr = 1000
    xr = jax.random.normal(kx2, (B, C, Lr), jnp.float32)
    y3 = jax.block_until_ready(stream(xr, w1, w2))
    ref3 = _se_ref(xr, w1, w2)
    assert y3.shape == (B, C, Lr), y3.shape
    assert bool(jnp.all(jnp.isfinite(y3)))
    assert jnp.allclose(y3, ref3, rtol=1e-4, atol=1e-5), float(jnp.max(jnp.abs(y3 - ref3)))

    print("KERNEL_OK")
</pallas_src>

<mosaic_0001>
module attributes {stable_mosaic.version = 11 : i64} {
  func.func @se_resident_kernel(%arg0: i32, %arg1: memref<1x64x2048xf32, #tpu.memory_space<vmem>>, %arg2: memref<64x4xf32, #tpu.memory_space<vmem>>, %arg3: memref<4x64xf32, #tpu.memory_space<vmem>>, %arg4: memref<1x64x2048xf32, #tpu.memory_space<vmem>>) attributes {dimension_semantics = [#tpu.dimension_semantics<parallel>], iteration_bounds = array<i64: 2>, scalar_prefetch = 0 : i64, scratch_operands = 0 : i64, tpu.core_type = #tpu.core_type<tc>, window_params = [{transform_indices = @transform_0, window_bounds = array<i64: 1, 64, 2048>}, {pipeline_mode = #tpu.pipeline_mode<synchronous>, transform_indices = @transform_1, window_bounds = array<i64: 64, 4>}, {pipeline_mode = #tpu.pipeline_mode<synchronous>, transform_indices = @transform_2, window_bounds = array<i64: 4, 64>}, {transform_indices = @transform_3, window_bounds = array<i64: 1, 64, 2048>}]} {
    %c0 = arith.constant 0 : index
    %c0_0 = arith.constant 0 : index
    %c0_1 = arith.constant 0 : index
    %0 = vector.load %arg1[%c0, %c0_0, %c0_1] : memref<1x64x2048xf32, #tpu.memory_space<vmem>>, vector<1x64x2048xf32>
    %cst = arith.constant dense<0.000000e+00> : vector<1x64xf32>
    %1 = vector.multi_reduction <add>, %0, %cst [2] : vector<1x64x2048xf32> to vector<1x64xf32>
    %cst_2 = arith.constant 4.8828125E-4 : f32
    %2 = vector.broadcast %cst_2 : f32 to vector<1x64xf32>
    %3 = arith.mulf %1, %2 : vector<1x64xf32>
    %c0_3 = arith.constant 0 : index
    %c0_4 = arith.constant 0 : index
    %4 = vector.load %arg2[%c0_3, %c0_4] : memref<64x4xf32, #tpu.memory_space<vmem>>, vector<64x4xf32>
    %cst_5 = arith.constant dense<0.000000e+00> : vector<1x4xf32>
    %5 = tpu.matmul %3, %4, %cst_5 {dimension_numbers = #tpu.dot_dimension_numbers<[1], [0], [0], [1], [0, 0, 1, 1], [], []>} : vector<1x64xf32>, vector<64x4xf32>, vector<1x4xf32> -> vector<1x4xf32>
    %cst_6 = arith.constant 0.000000e+00 : f32
    %6 = vector.broadcast %cst_6 : f32 to vector<1x4xf32>
    %7 = arith.maximumf %5, %6 : vector<1x4xf32>
    %c0_7 = arith.constant 0 : index
    %c0_8 = arith.constant 0 : index
    %8 = vector.load %arg3[%c0_7, %c0_8] : memref<4x64xf32, #tpu.memory_space<vmem>>, vector<4x64xf32>
    %cst_9 = arith.constant dense<0.000000e+00> : vector<1x64xf32>
    %9 = tpu.matmul %7, %8, %cst_9 {dimension_numbers = #tpu.dot_dimension_numbers<[1], [0], [0], [1], [0, 0, 1, 1], [], []>} : vector<1x4xf32>, vector<4x64xf32>, vector<1x64xf32> -> vector<1x64xf32>
    %10 = arith.negf %9 : vector<1x64xf32>
    %11 = math.exp %10 : vector<1x64xf32>
    %cst_10 = arith.constant 1.000000e+00 : f32
    %12 = vector.broadcast %cst_10 : f32 to vector<1x64xf32>
    %13 = arith.addf %12, %11 : vector<1x64xf32>
    %14 = arith.divf %12, %13 : vector<1x64xf32>
    %15 = vector.shape_cast %14 : vector<1x64xf32> to vector<1x64x1xf32>
    %16 = vector.broadcast %15 : vector<1x64x1xf32> to vector<1x64x2048xf32>
    %17 = arith.mulf %0, %16 : vector<1x64x2048xf32>
    %c0_11 = arith.constant 0 : index
    %c0_12 = arith.constant 0 : index
    %c0_13 = arith.constant 0 : index
    %18 = vector.load %arg4[%c0_11, %c0_12, %c0_13] : memref<1x64x2048xf32, #tpu.memory_space<vmem>>, vector<1x64x2048xf32>
    tpu.vector_store %arg4[%c0_11, %c0_12, %c0_13], %17 {strides = array<i32>} : memref<1x64x2048xf32, #tpu.memory_space<vmem>>, vector<1x64x2048xf32>,
    return
  }
  func.func @transform_0(%arg0: i32) -> (i32, i32, i32) {
    %c0_i32 = arith.constant 0 : i32
    %c0_i32_0 = arith.constant 0 : i32
    %c0_i32_1 = arith.constant 0 : i32
    return %arg0, %c0_i32, %c0_i32_0 : i32, i32, i32
  }
  func.func @transform_1(%arg0: i32) -> (i32, i32) {
    %c0_i32 = arith.constant 0 : i32
    %c0_i32_0 = arith.constant 0 : i32
    %c0_i32_1 = arith.constant 0 : i32
    return %c0_i32, %c0_i32_0 : i32, i32
  }
  func.func @transform_2(%arg0: i32) -> (i32, i32) {
    %c0_i32 = arith.constant 0 : i32
    %c0_i32_0 = arith.constant 0 : i32
    %c0_i32_1 = arith.constant 0 : i32
    return %c0_i32, %c0_i32_0 : i32, i32
  }
  func.func @transform_3(%arg0: i32) -> (i32, i32, i32) {
    %c0_i32 = arith.constant 0 : i32
    %c0_i32_0 = arith.constant 0 : i32
    %c0_i32_1 = arith.constant 0 : i32
    return %arg0, %c0_i32, %c0_i32_0 : i32, i32, i32
  }
}

</mosaic_0001>

<llo_original>
// kernel: se_block.1
$region0: #{se_block.1}
  #allocation0 [shape = 'u32[]', space=smem, size = 0x4, offset = 0x4, fixed_abs, tag = 'smem constant byte address 0x4 - core index']
  #allocation1 [shape = 'u32[72,128]{1,0:T(1,128)}', space=vmem, size = 0x9000, scoped, tag = 'internal scratch']
  %s0 = inlined_call_operand.hbm [shape: f32[2,64,2048], index: 0, kind: input, shape index: {}]
  %s1 = inlined_call_operand.vmem [shape: f32[64,4], index: 1, kind: input, shape index: {}]
  %s2 = inlined_call_operand.vmem [shape: f32[4,64], index: 2, kind: input, shape index: {}]
  %s3 = inlined_call_operand.hbm [shape: f32[2,64,2048], index: 3, kind: output, shape index: {}]
  %s4 = sld [smem:[#allocation0]]
  $region49: #{se_block.1} parent=0
    _
  %s6 = ssub.s32 1, %s4
  %s7 = scalar_select 0, %s6, %s4
  $region1: #{se_block.1} parent=0
    #allocation2 [shape = 'u8[1048576]{0}', space=vmem, size = 0x100000, scoped, tag = 'input window, operand 0']
    #allocation3 [shape = 's32[2]{0}', space=sflag, size = 0x8, scoped, tag = 'scoped memory for se_block.1']
    #allocation4 [shape = 's32[2]{0}', space=sflag, size = 0x8, scoped, tag = 'scoped memory for se_block.1']
    #allocation5 [shape = 'u8[1048576]{0}', space=vmem, size = 0x100000, scoped, tag = 'output window, operand 0']
    %8 = vsyncpa [#allocation3], 0
    %s9 = scalar_lea.sflag [#allocation3], 1
    %10 = vsyncpa %s9, 0
    %11 = vsyncpa [#allocation4], 0
    %s12 = scalar_lea.sflag [#allocation4], 1
    %13 = vsyncpa %s12, 0
    loop: start=0, step=1, limit=4
    $region2: #{se_block.1} parent=1 // loop_pre_header
      _
    $region3: #{se_block.1} parent=1 // loop_header
      %s15 = sphi 0, %s19
      %p16 = scmp.ge.s32.totalorder %s15, 4
      %s25 = sphi 0, %s27
      %s28 = sphi 0, %s25
      %s29 = sphi 0, %s28
      %s45 = sphi 0, %s29
      %s49 = sphi 0, %s49
      %s51 = sphi 0, %s49
      %s52 = sphi 0, %s51
      %s66 = sphi 0, %s52
      %s70 = sphi 0, %s70
      %s72 = sphi 0, %s70
      %s73 = sphi 0, %s72
      %s87 = sphi 0, %s73
      %s93 = sphi 0, %s95
      %s96 = sphi 0, %s93
      %s97 = sphi 0, %s96
      %s113 = sphi 0, %s97
    $region4: #{se_block.1} parent=1 // loop_header_branch
      %18 = sbr.rel (%p16) target = $region8
    $region5: #{se_block.1} parent=1 // loop_body
      %s20 = ssub.s32 %s15, 1
      %s21 = ssub.s32 %s15, 2
      %s22 = sadd.s32 %s15, 1
      %s23 = ssub.s32 %s15, %s22
      %p24 = scmp.eq.s32.totalorder %s23, 0
      %s26 = sadd.s32 %s25, 1
      %s27 = scalar_select %p24, %s25, %s26
      %p30 = pneg %p24
      %p31 = scmp.eq.s32.totalorder %s15, 1
      %p32 = por %p30, %p31
      %p33 = scmp.ne.s32.totalorder %s25, %s28
      %p34 = scmp.eq.s32.totalorder %s15, 0
      %p35 = por %p33, %p34
      %p36 = scmp.ne.s32.totalorder %s25, %s28
      %p37 = scmp.eq.s32.totalorder %s20, 1
      %p38 = por %p36, %p37
      %p39 = scmp.ne.s32.totalorder %s28, %s29
      %p40 = scmp.eq.s32.totalorder %s20, 0
      %p41 = por %p39, %p40
      %p42 = scmp.ne.s32.totalorder %s28, %s29
      %p43 = scmp.eq.s32.totalorder %s21, 1
      %p44 = por %p42, %p43
      %p46 = scmp.ne.s32.totalorder %s29, %s45
      %p47 = scmp.eq.s32.totalorder %s21, 0
      %p48 = por %p46, %p47
      %s50 = sadd.s32 %s49, 1
      %p53 = scmp.eq.s32.totalorder %s15, 1
      %p54 = scmp.ne.s32.totalorder %s49, %s51
      %p55 = scmp.eq.s32.totalorder %s15, 0
      %p56 = por %p54, %p55
      %p57 = scmp.ne.s32.totalorder %s49, %s51
      %p58 = scmp.eq.s32.totalorder %s20, 1
      %p59 = por %p57, %p58
      %p60 = scmp.ne.s32.totalorder %s51, %s52
      %p61 = scmp.eq.s32.totalorder %s20, 0
      %p62 = por %p60, %p61
      %p63 = scmp.ne.s32.totalorder %s51, %s52
      %p64 = scmp.eq.s32.totalorder %s21, 1
      %p65 = por %p63, %p64
      %p67 = scmp.ne.s32.totalorder %s52, %s66
      %p68 = scmp.eq.s32.totalorder %s21, 0
      %p69 = por %p67, %p68
      %s71 = sadd.s32 %s70, 1
      %p74 = scmp.eq.s32.totalorder %s15, 1
      %p75 = scmp.ne.s32.totalorder %s70, %s72
      %p76 = scmp.eq.s32.totalorder %s15, 0
      %p77 = por %p75, %p76
      %p78 = scmp.ne.s32.totalorder %s70, %s72
      %p79 = scmp.eq.s32.totalorder %s20, 1
      %p80 = por %p78, %p79
      %p81 = scmp.ne.s32.totalorder %s72, %s73
      %p82 = scmp.eq.s32.totalorder %s20, 0
      %p83 = por %p81, %p82
      %p84 = scmp.ne.s32.totalorder %s72, %s73
      %p85 = scmp.eq.s32.totalorder %s21, 1
      %p86 = por %p84, %p85
      %p88 = scmp.ne.s32.totalorder %s73, %s87
      %p89 = scmp.eq.s32.totalorder %s21, 0
      %p90 = por %p88, %p89
      %s91 = ssub.s32 %s15, %s22
      %p92 = scmp.eq.s32.totalorder %s91, 0
      %s94 = sadd.s32 %s93, 1
      %s95 = scalar_select %p92, %s93, %s94
      %p98 = pneg %p92
      %p99 = scmp.eq.s32.totalorder %s15, 1
      %p100 = por %p98, %p99
      %p101 = scmp.ne.s32.totalorder %s93, %s96
      %p102 = scmp.eq.s32.totalorder %s15, 0
      %p103 = por %p101, %p102
      %p104 = scmp.ne.s32.totalorder %s93, %s96
      %p105 = scmp.eq.s32.totalorder %s20, 1
      %p106 = por %p104, %p105
      %p107 = scmp.ne.s32.totalorder %s96, %s97
      %p108 = scmp.eq.s32.totalorder %s20, 0
      %p109 = por %p107, %p108
      %p110 = scmp.ne.s32.totalorder %s96, %s97
      %p111 = scmp.eq.s32.totalorder %s21, 1
      %p112 = por %p110, %p111
      %p114 = scmp.ne.s32.totalorder %s97, %s113
      %p115 = scmp.eq.s32.totalorder %s21, 0
      %p116 = por %p114, %p115
      %p117 = scmp.le.s32.totalorder 1, %s15
      %p118 = scmp.lt.s32.totalorder %s15, 3
      %p119 = pnand %p117, %p118
      %p120 = pneg %p119
      // Predicated region
      $region9: #{se_block.1} parent=5 // pred_check
        _
      $region10: #{se_block.1} parent=5 // pred_check_branch
        %122 = sbr.rel (%p119) target = $region12
      $region11: #{se_block.1} parent=5 // pred_region
        %s123 = ssub.s32 %s15, 1
        // Predicated region
        $region13: #{se_block.1} parent=11 // pred_check
          %p124 = pneg %p62
        $region14: #{se_block.1} parent=11 // pred_check_branch
          %126 = sbr.rel (%p124) target = $region16
        $region15: #{se_block.1} parent=11 // pred_region
          _
        $region16: #{se_block.1} parent=11 // pred_fallthru
          _
        // Predicated region
        $region17: #{se_block.1} parent=11 // pred_check
          %p127 = pneg %p83
        $region18: #{se_block.1} parent=11 // pred_check_branch
          %129 = sbr.rel (%p127) target = $region20
        $region19: #{se_block.1} parent=11 // pred_region
          _
        $region20: #{se_block.1} parent=11 // pred_fallthru
          _
      $region12: #{se_block.1} parent=5 // pred_fallthru
        _
      %p130 = scmp.lt.s32.totalorder %s15, 2
      // Predicated region
      $region21: #{se_block.1} parent=5 // pred_check
        %p131 = pneg %p130
      $region22: #{se_block.1} parent=5 // pred_check_branch
        %133 = sbr.rel (%p131) target = $region24
      $region23: #{se_block.1} parent=5 // pred_region
        // Predicated region
        $region25: #{se_block.1} parent=23 // pred_check
          %p134 = pneg %p35
        $region26: #{se_block.1} parent=23 // pred_check_branch
          %136 = sbr.rel (%p134) target = $region28
        $region27: #{se_block.1} parent=23 // pred_region
          %s137 = sand.u32 %s25, 1
          %s138 = scalar_lea.sflag [#allocation3], %s137
          %s139 = sand.u32 %s25, 1
          %s140 = smul.addr %s139, 1024
          %s141 = scalar_lea.vmem [#allocation2], %s140
          %143 = vsyncadd %s138, 0
          %s144 = smul.addr %s15, 128
          %s145 = smul.addr %s144, 8
          %s146 = scalar_lea.hbm %s0, %s145
          %s147 = sshll.u32 %s146, 4
          %s148 = int_to_ptr.hbm [resolvable:$true] %s147
          %s149 = sshll.u32 %s141, 4
          %s150 = int_to_ptr.vmem [resolvable:$true] %s149
          %155 = dma.hbm_to_vmem [thread:$0]  %s148, 16384, %s150, %s138, 2048, 2048, 128
        $region28: #{se_block.1} parent=23 // pred_fallthru
          _
      $region24: #{se_block.1} parent=5 // pred_fallthru
        _
      %p156 = scmp.le.s32.totalorder 1, %s15
      %p157 = scmp.lt.s32.totalorder %s15, 3
      %p158 = pnand %p156, %p157
      %p159 = pneg %p158
      // Predicated region
      $region29: #{se_block.1} parent=5 // pred_check
        _
      $region30: #{se_block.1} parent=5 // pred_check_branch
        %161 = sbr.rel (%p158) target = $region32
      $region31: #{se_block.1} parent=5 // pred_region
        %s162 = ssub.s32 %s15, 1
        %s163 = sand.u32 %s28, 1
        %s164 = scalar_lea.sflag [#allocation3], %s163
        %s165 = sand.u32 %s28, 1
        %s166 = smul.addr %s165, 1024
        %s167 = scalar_lea.vmem [#allocation2], %s166
        // Predicated region
        $region33: #{se_block.1} parent=31 // pred_check
          %p168 = pneg %p41
        $region34: #{se_block.1} parent=31 // pred_check_branch
          %170 = sbr.rel (%p168) target = $region36
        $region35: #{se_block.1} parent=31 // pred_region
          %172 = dma.done %s164, 16384
        $region36: #{se_block.1} parent=31 // pred_fallthru
          _
        %s173 = sand.u32 %s28, 1
        %s174 = scalar_lea.sflag [#allocation3], %s173
        %s175 = sand.u32 %s28, 1
        %s176 = smul.addr %s175, 1024
        %s177 = scalar_lea.vmem [#allocation2], %s176
        %p178 = pneg %p41
        %p179 = pneg %p38
        %p180 = pneg %p62
        %p181 = pneg %p59
        %p182 = pneg %p83
        %p183 = pneg %p80
        %p184 = pneg %p109
        %p185 = pneg %p106
        %s186 = sand.u32 %s96, 1
        %s187 = scalar_lea.sflag [#allocation4], %s186
        %s188 = sand.u32 %s96, 1
        %s189 = smul.addr %s188, 1024
        %s190 = scalar_lea.vmem [#allocation5], %s189
        %v191 = vld [vmem:[%s167] sm:$0xff]
        %v192 = vld [vmem:[%s167 + $0x8] sm:$0xff]
        %v193 = vld [vmem:[%s167 + $0x10] sm:$0xff]
        %v194 = vld [vmem:[%s167 + $0x18] sm:$0xff]
        %v195 = vld [vmem:[%s167 + $0x20] sm:$0xff]
        %v196 = vld [vmem:[%s167 + $0x28] sm:$0xff]
        %v197 = vld [vmem:[%s167 + $0x30] sm:$0xff]
        %v198 = vld [vmem:[%s167 + $0x38] sm:$0xff]
        %v199 = vld [vmem:[%s167 + $0x40] sm:$0xff]
        %v200 = vld [vmem:[%s167 + $0x48] sm:$0xff]
        %v201 = vld [vmem:[%s167 + $0x50] sm:$0xff]
        %v202 = vld [vmem:[%s167 + $0x58] sm:$0xff]
        %v203 = vld [vmem:[%s167 + $0x60] sm:$0xff]
        %v204 = vld [vmem:[%s167 + $0x68] sm:$0xff]
        %v205 = vld [vmem:[%s167 + $0x70] sm:$0xff]
        %v206 = vld [vmem:[%s167 + $0x78] sm:$0xff]
        %v207 = vld [vmem:[%s167 + $0x80] sm:$0xff]
        %v208 = vld [vmem:[%s167 + $0x88] sm:$0xff]
        %v209 = vld [vmem:[%s167 + $0x90] sm:$0xff]
        %v210 = vld [vmem:[%s167 + $0x98] sm:$0xff]
        %v211 = vld [vmem:[%s167 + $0xa0] sm:$0xff]
        %v212 = vld [vmem:[%s167 + $0xa8] sm:$0xff]
        %v213 = vld [vmem:[%s167 + $0xb0] sm:$0xff]
        %v214 = vld [vmem:[%s167 + $0xb8] sm:$0xff]
        %v215 = vld [vmem:[%s167 + $0xc0] sm:$0xff]
        %v216 = vld [vmem:[%s167 + $0xc8] sm:$0xff]
        %v217 = vld [vmem:[%s167 + $0xd0] sm:$0xff]
        %v218 = vld [vmem:[%s167 + $0xd8] sm:$0xff]
        %v219 = vld [vmem:[%s167 + $0xe0] sm:$0xff]
        %v220 = vld [vmem:[%s167 + $0xe8] sm:$0xff]
        %v221 = vld [vmem:[%s167 + $0xf0] sm:$0xff]
        %v222 = vld [vmem:[%s167 + $0xf8] sm:$0xff]
        %v223 = vld [vmem:[%s167 + $0x100] sm:$0xff]
        %v224 = vld [vmem:[%s167 + $0x108] sm:$0xff]
        %v225 = vld [vmem:[%s167 + $0x110] sm:$0xff]
        %v226 = vld [vmem:[%s167 + $0x118] sm:$0xff]
        %v227 = vld [vmem:[%s167 + $0x120] sm:$0xff]
        %v228 = vld [vmem:[%s167 + $0x128] sm:$0xff]
        %v229 = vld [vmem:[%s167 + $0x130] sm:$0xff]
        %v230 = vld [vmem:[%s167 + $0x138] sm:$0xff]
        %v231 = vld [vmem:[%s167 + $0x140] sm:$0xff]
        %v232 = vld [vmem:[%s167 + $0x148] sm:$0xff]
        %v233 = vld [vmem:[%s167 + $0x150] sm:$0xff]
        %v234 = vld [vmem:[%s167 + $0x158] sm:$0xff]
        %v235 = vld [vmem:[%s167 + $0x160] sm:$0xff]
        %v236 = vld [vmem:[%s167 + $0x168] sm:$0xff]
        %v237 = vld [vmem:[%s167 + $0x170] sm:$0xff]
        %v238 = vld [vmem:[%s167 + $0x178] sm:$0xff]
        %v239 = vld [vmem:[%s167 + $0x180] sm:$0xff]
        %v240 = vld [vmem:[%s167 + $0x188] sm:$0xff]
        %v241 = vld [vmem:[%s167 + $0x190] sm:$0xff]
        %v242 = vld [vmem:[%s167 + $0x198] sm:$0xff]
        %v243 = vld [vmem:[%s167 + $0x1a0] sm:$0xff]
        %v244 = vld [vmem:[%s167 + $0x1a8] sm:$0xff]
        %v245 = vld [vmem:[%s167 + $0x1b0] sm:$0xff]
        %v246 = vld [vmem:[%s167 + $0x1b8] sm:$0xff]
        %v247 = vld [vmem:[%s167 + $0x1c0] sm:$0xff]
        %v248 = vld [vmem:[%s167 + $0x1c8] sm:$0xff]
        %v249 = vld [vmem:[%s167 + $0x1d0] sm:$0xff]
        %v250 = vld [vmem:[%s167 + $0x1d8] sm:$0xff]
        %v251 = vld [vmem:[%s167 + $0x1e0] sm:$0xff]
        %v252 = vld [vmem:[%s167 + $0x1e8] sm:$0xff]
        %v253 = vld [vmem:[%s167 + $0x1f0] sm:$0xff]
        %v254 = vld [vmem:[%s167 + $0x1f8] sm:$0xff]
        %v255 = vld [vmem:[%s167 + $0x200] sm:$0xff]
        %v256 = vld [vmem:[%s167 + $0x208] sm:$0xff]
        %v257 = vld [vmem:[%s167 + $0x210] sm:$0xff]
        %v258 = vld [vmem:[%s167 + $0x218] sm:$0xff]
        %v259 = vld [vmem:[%s167 + $0x220] sm:$0xff]
        %v260 = vld [vmem:[%s167 + $0x228] sm:$0xff]
        %v261 = vld [vmem:[%s167 + $0x230] sm:$0xff]
        %v262 = vld [vmem:[%s167 + $0x238] sm:$0xff]
        %v263 = vld [vmem:[%s167 + $0x240] sm:$0xff]
        %v264 = vld [vmem:[%s167 + $0x248] sm:$0xff]
        %v265 = vld [vmem:[%s167 + $0x250] sm:$0xff]
        %v266 = vld [vmem:[%s167 + $0x258] sm:$0xff]
        %v267 = vld [vmem:[%s167 + $0x260] sm:$0xff]
        %v268 = vld [vmem:[%s167 + $0x268] sm:$0xff]
        %v269 = vld [vmem:[%s167 + $0x270] sm:$0xff]
        %v270 = vld [vmem:[%s167 + $0x278] sm:$0xff]
        %v271 = vld [vmem:[%s167 + $0x280] sm:$0xff]
        %v272 = vld [vmem:[%s167 + $0x288] sm:$0xff]
        %v273 = vld [vmem:[%s167 + $0x290] sm:$0xff]
        %v274 = vld [vmem:[%s167 + $0x298] sm:$0xff]
        %v275 = vld [vmem:[%s167 + $0x2a0] sm:$0xff]
        %v276 = vld [vmem:[%s167 + $0x2a8] sm:$0xff]
        %v277 = vld [vmem:[%s167 + $0x2b0] sm:$0xff]
        %v278 = vld [vmem:[%s167 + $0x2b8] sm:$0xff]
        %v279 = vld [vmem:[%s167 + $0x2c0] sm:$0xff]
        %v280 = vld [vmem:[%s167 + $0x2c8] sm:$0xff]
        %v281 = vld [vmem:[%s167 + $0x2d0] sm:$0xff]
        %v282 = vld [vmem:[%s167 + $0x2d8] sm:$0xff]
        %v283 = vld [vmem:[%s167 + $0x2e0] sm:$0xff]
        %v284 = vld [vmem:[%s167 + $0x2e8] sm:$0xff]
        %v285 = vld [vmem:[%s167 + $0x2f0] sm:$0xff]
        %v286 = vld [vmem:[%s167 + $0x2f8] sm:$0xff]
        %v287 = vld [vmem:[%s167 + $0x300] sm:$0xff]
        %v288 = vld [vmem:[%s167 + $0x308] sm:$0xff]
        %v289 = vld [vmem:[%s167 + $0x310] sm:$0xff]
        %v290 = vld [vmem:[%s167 + $0x318] sm:$0xff]
        %v291 = vld [vmem:[%s167 + $0x320] sm:$0xff]
        %v292 = vld [vmem:[%s167 + $0x328] sm:$0xff]
        %v293 = vld [vmem:[%s167 + $0x330] sm:$0xff]
        %v294 = vld [vmem:[%s167 + $0x338] sm:$0xff]
        %v295 = vld [vmem:[%s167 + $0x340] sm:$0xff]
        %v296 = vld [vmem:[%s167 + $0x348] sm:$0xff]
        %v297 = vld [vmem:[%s167 + $0x350] sm:$0xff]
        %v298 = vld [vmem:[%s167 + $0x358] sm:$0xff]
        %v299 = vld [vmem:[%s167 + $0x360] sm:$0xff]
        %v300 = vld [vmem:[%s167 + $0x368] sm:$0xff]
        %v301 = vld [vmem:[%s167 + $0x370] sm:$0xff]
        %v302 = vld [vmem:[%s167 + $0x378] sm:$0xff]
        %v303 = vld [vmem:[%s167 + $0x380] sm:$0xff]
        %v304 = vld [vmem:[%s167 + $0x388] sm:$0xff]
        %v305 = vld [vmem:[%s167 + $0x390] sm:$0xff]
        %v306 = vld [vmem:[%s167 + $0x398] sm:$0xff]
        %v307 = vld [vmem:[%s167 + $0x3a0] sm:$0xff]
        %v308 = vld [vmem:[%s167 + $0x3a8] sm:$0xff]
        %v309 = vld [vmem:[%s167 + $0x3b0] sm:$0xff]
        %v310 = vld [vmem:[%s167 + $0x3b8] sm:$0xff]
        %v311 = vld [vmem:[%s167 + $0x3c0] sm:$0xff]
        %v312 = vld [vmem:[%s167 + $0x3c8] sm:$0xff]
        %v313 = vld [vmem:[%s167 + $0x3d0] sm:$0xff]
        %v314 = vld [vmem:[%s167 + $0x3d8] sm:$0xff]
        %v315 = vld [vmem:[%s167 + $0x3e0] sm:$0xff]
        %v316 = vld [vmem:[%s167 + $0x3e8] sm:$0xff]
        %v317 = vld [vmem:[%s167 + $0x3f0] sm:$0xff]
        %v318 = vld [vmem:[%s167 + $0x3f8] sm:$0xff]
        %v319 = vadd.f32 %v191, %v192
        %v320 = vadd.f32 %v319, %v193
        %v321 = vadd.f32 %v320, %v194
        %v322 = vadd.f32 %v321, %v195
        %v323 = vadd.f32 %v322, %v196
        %v324 = vadd.f32 %v323, %v197
        %v325 = vadd.f32 %v324, %v198
        %v326 = vadd.f32 %v325, %v199
        %v327 = vadd.f32 %v326, %v200
        %v328 = vadd.f32 %v327, %v201
        %v329 = vadd.f32 %v328, %v202
        %v330 = vadd.f32 %v329, %v203
        %v331 = vadd.f32 %v330, %v204
        %v332 = vadd.f32 %v331, %v205
        %v333 = vadd.f32 %v332, %v206
        %334 = vadd.xlane.f32.xlu0 %v333
        %v335 = vpop.xlane.xlu0 %334
        %v336 = vadd.f32 %v207, %v208
        %v337 = vadd.f32 %v336, %v209
        %v338 = vadd.f32 %v337, %v210
        %v339 = vadd.f32 %v338, %v211
        %v340 = vadd.f32 %v339, %v212
        %v341 = vadd.f32 %v340, %v213
        %v342 = vadd.f32 %v341, %v214
        %v343 = vadd.f32 %v342, %v215
        %v344 = vadd.f32 %v343, %v216
        %v345 = vadd.f32 %v344, %v217
        %v346 = vadd.f32 %v345, %v218
        %v347 = vadd.f32 %v346, %v219
        %v348 = vadd.f32 %v347, %v220
        %v349 = vadd.f32 %v348, %v221
        %v350 = vadd.f32 %v349, %v222
        %351 = vadd.xlane.f32.xlu0 %v350
        %v352 = vpop.xlane.xlu0 %351
        %v353 = vadd.f32 %v223, %v224
        %v354 = vadd.f32 %v353, %v225
        %v355 = vadd.f32 %v354, %v226
        %v356 = vadd.f32 %v355, %v227
        %v357 = vadd.f32 %v356, %v228
        %v358 = vadd.f32 %v357, %v229
        %v359 = vadd.f32 %v358, %v230
        %v360 = vadd.f32 %v359, %v231
        %v361 = vadd.f32 %v360, %v232
        %v362 = vadd.f32 %v361, %v233
        %v363 = vadd.f32 %v362, %v234
        %v364 = vadd.f32 %v363, %v235
        %v365 = vadd.f32 %v364, %v236
        %v366 = vadd.f32 %v365, %v237
        %v367 = vadd.f32 %v366, %v238
        %368 = vadd.xlane.f32.xlu0 %v367
        %v369 = vpop.xlane.xlu0 %368
        %v370 = vadd.f32 %v239, %v240
        %v371 = vadd.f32 %v370, %v241
        %v372 = vadd.f32 %v371, %v242
        %v373 = vadd.f32 %v372, %v243
        %v374 = vadd.f32 %v373, %v244
        %v375 = vadd.f32 %v374, %v245
        %v376 = vadd.f32 %v375, %v246
        %v377 = vadd.f32 %v376, %v247
        %v378 = vadd.f32 %v377, %v248
        %v379 = vadd.f32 %v378, %v249
        %v380 = vadd.f32 %v379, %v250
        %v381 = vadd.f32 %v380, %v251
        %v382 = vadd.f32 %v381, %v252
        %v383 = vadd.f32 %v382, %v253
        %v384 = vadd.f32 %v383, %v254
        %385 = vadd.xlane.f32.xlu0 %v384
        %v386 = vpop.xlane.xlu0 %385
        %v387 = vadd.f32 %v255, %v256
        %v388 = vadd.f32 %v387, %v257
        %v389 = vadd.f32 %v388, %v258
        %v390 = vadd.f32 %v389, %v259
        %v391 = vadd.f32 %v390, %v260
        %v392 = vadd.f32 %v391, %v261
        %v393 = vadd.f32 %v392, %v262
        %v394 = vadd.f32 %v393, %v263
        %v395 = vadd.f32 %v394, %v264
        %v396 = vadd.f32 %v395, %v265
        %v397 = vadd.f32 %v396, %v266
        %v398 = vadd.f32 %v397, %v267
        %v399 = vadd.f32 %v398, %v268
        %v400 = vadd.f32 %v399, %v269
        %v401 = vadd.f32 %v400, %v270
        %402 = vadd.xlane.f32.xlu0 %v401
        %v403 = vpop.xlane.xlu0 %402
        %v404 = vadd.f32 %v271, %v272
        %v405 = vadd.f32 %v404, %v273
        %v406 = vadd.f32 %v405, %v274
        %v407 = vadd.f32 %v406, %v275
        %v408 = vadd.f32 %v407, %v276
        %v409 = vadd.f32 %v408, %v277
        %v410 = vadd.f32 %v409, %v278
        %v411 = vadd.f32 %v410, %v279
        %v412 = vadd.f32 %v411, %v280
        %v413 = vadd.f32 %v412, %v281
        %v414 = vadd.f32 %v413, %v282
        %v415 = vadd.f32 %v414, %v283
        %v416 = vadd.f32 %v415, %v284
        %v417 = vadd.f32 %v416, %v285
        %v418 = vadd.f32 %v417, %v286
        %419 = vadd.xlane.f32.xlu0 %v418
        %v420 = vpop.xlane.xlu0 %419
        %v421 = vadd.f32 %v287, %v288
        %v422 = vadd.f32 %v421, %v289
        %v423 = vadd.f32 %v422, %v290
        %v424 = vadd.f32 %v423, %v291
        %v425 = vadd.f32 %v424, %v292
        %v426 = vadd.f32 %v425, %v293
        %v427 = vadd.f32 %v426, %v294
        %v428 = vadd.f32 %v427, %v295
        %v429 = vadd.f32 %v428, %v296
        %v430 = vadd.f32 %v429, %v297
        %v431 = vadd.f32 %v430, %v298
        %v432 = vadd.f32 %v431, %v299
        %v433 = vadd.f32 %v432, %v300
        %v434 = vadd.f32 %v433, %v301
        %v435 = vadd.f32 %v434, %v302
        %436 = vadd.xlane.f32.xlu0 %v435
        %v437 = vpop.xlane.xlu0 %436
        %v438 = vadd.f32 %v303, %v304
        %v439 = vadd.f32 %v438, %v305
        %v440 = vadd.f32 %v439, %v306
        %v441 = vadd.f32 %v440, %v307
        %v442 = vadd.f32 %v441, %v308
        %v443 = vadd.f32 %v442, %v309
        %v444 = vadd.f32 %v443, %v310
        %v445 = vadd.f32 %v444, %v311
        %v446 = vadd.f32 %v445, %v312
        %v447 = vadd.f32 %v446, %v313
        %v448 = vadd.f32 %v447, %v314
        %v449 = vadd.f32 %v448, %v315
        %v450 = vadd.f32 %v449, %v316
        %v451 = vadd.f32 %v450, %v317
        %v452 = vadd.f32 %v451, %v318
        %453 = vadd.xlane.f32.xlu0 %v452
        %v454 = vpop.xlane.xlu0 %453
        %v455 = vmul.f32 %v335, 0.00048828125
        %v456 = vmul.f32 %v352, 0.00048828125
        %v457 = vmul.f32 %v369, 0.00048828125
        %v458 = vmul.f32 %v386, 0.00048828125
        %v459 = vmul.f32 %v403, 0.00048828125
        %v460 = vmul.f32 %v420, 0.00048828125
        %v461 = vmul.f32 %v437, 0.00048828125
        %v462 = vmul.f32 %v454, 0.00048828125
        %v463 = vld [vmem:[%s1] sm:$0xff]
        %v464 = vld [vmem:[%s1 + $0x8] sm:$0xff]
        %v465 = vld [vmem:[%s1 + $0x10] sm:$0xff]
        %v466 = vld [vmem:[%s1 + $0x18] sm:$0xff]
        %v467 = vld [vmem:[%s1 + $0x20] sm:$0xff]
        %v468 = vld [vmem:[%s1 + $0x28] sm:$0xff]
        %v469 = vld [vmem:[%s1 + $0x30] sm:$0xff]
        %v470 = vld [vmem:[%s1 + $0x38] sm:$0xff]
        %v479 = vlaneseq
        %v480 = vand.u32 %v479, 127
        %v481 = vperm.slane %v455, %v480
        %v482 = vadd.s32 %v480, 4294967288
        %v483 = vperm.slane %v456, %v482
        %vm484 = vcmask 130112
        %v485 = vsel %vm484, %v483, %v481
        %v486 = vadd.s32 %v480, 4294967280
        %v487 = vperm.slane %v457, %v486
        %vm488 = vcmask 195712
        %v489 = vsel %vm488, %v487, %v485
        %v490 = vadd.s32 %v480, 4294967272
        %v491 = vperm.slane %v458, %v490
        %vm492 = vcmask 261312
        %v493 = vsel %vm492, %v491, %v489
        %v494 = vadd.s32 %v480, 4294967264
        %v495 = vperm.slane %v459, %v494
        %vm496 = vcmask 326912
        %v497 = vsel %vm496, %v495, %v493
        %v498 = vadd.s32 %v480, 4294967256
        %v499 = vperm.slane %v460, %v498
        %vm500 = vcmask 392512
        %v501 = vsel %vm500, %v499, %v497
        %v502 = vadd.s32 %v480, 4294967248
        %v503 = vperm.slane %v461, %v502
        %vm504 = vcmask 458112
        %v505 = vsel %vm504, %v503, %v501
        %v506 = vadd.s32 %v480, 4294967240
        %v507 = vperm.slane %v462, %v506
        %vm508 = vcmask 523712
        %v509 = vsel %vm508, %v507, %v505
        %vm510 = vcmask 523264
        %v511 = vsel %vm510, %v509, 0
        %513 = vmatpush.msra.mxu0 0.0
        %514 = vmatpush.msra.mxu0 0.0
        %515 = vmatpush.msra.mxu0 0.0
        %516 = vmatpush.msra.mxu0 0.0
        %517 = vmatpush.msra.mxu0 0.0
        %518 = vmatpush.msra.mxu0 0.0
        %519 = vmatpush.msra.mxu0 0.0
        %520 = vmatpush.msra.mxu0 0.0
        %521 = vmatpush.msra.mxu0 %v470
        %522 = vmatpush.msra.mxu0 %v469
        %523 = vmatpush.msra.mxu0 %v468
        %524 = vmatpush.msra.mxu0 %v467
        %525 = vmatpush.msra.mxu0 %v466
        %526 = vmatpush.msra.mxu0 %v465
        %527 = vmatpush.msra.mxu0 %v464
        %528 = vmatpush.msra.mxu0 %v463
        %529 = vmatmul.f32.gmra.mxu0 %v511
        %v530 = vpop.f32.mrf.mxu0
        %v531 = vadd.f32 0.0, %v530
        %532 = vdwg.mxu0
        %v533 = vmax.f32 %v531, 0.0
        %v534 = vld [vmem:[%s2] sm:$0xf]
        %vm535 = vcmask 31744
        %v537 = vsel %vm535, %v533, 0
        %vm539 = vcmask 1043456
        %v541 = vsel %vm539, %v534, 0
        %543 = vmatpush.msra.mxu0 0.0
        %544 = vmatpush.msra.mxu0 0.0
        %545 = vmatpush.msra.mxu0 0.0
        %546 = vmatpush.msra.mxu0 0.0
        %547 = vmatpush.msra.mxu0 0.0
        %548 = vmatpush.msra.mxu0 0.0
        %549 = vmatpush.msra.mxu0 0.0
        %550 = vmatpush.msra.mxu0 0.0
        %551 = vmatpush.msra.mxu0 0.0
        %552 = vmatpush.msra.mxu0 0.0
        %553 = vmatpush.msra.mxu0 0.0
        %554 = vmatpush.msra.mxu0 0.0
        %555 = vmatpush.msra.mxu0 0.0
        %556 = vmatpush.msra.mxu0 0.0
        %557 = vmatpush.msra.mxu0 0.0
        %558 = vmatpush.msra.mxu0 %v541
        %559 = vmatmul.f32.gmra.mxu0 %v537
        %v560 = vpop.f32.mrf.mxu0
        %v561 = vadd.f32 0.0, %v560
        %562 = vdwg.mxu0
        %v563 = vxor.u32 %v561, 2147483648
        %v564 = vmul.f32 %v563, 1.442695
        %v565 = vpow.pop %v564
        %v566 = vadd.f32 %v565, 1.0
        %v567 = vrcp.pop %v566
        %v568 = vmul.f32 %v566, %v567
        %v569 = vsub.f32 1.0, %v568
        %v570 = vmul.f32 %v567, %v569
        %v571 = vadd.f32 %v567, %v570
        %vm572 = vweird.f32 %v566
        %vm573 = vweird.f32 %v567
        %vm574 = vmor %vm572, %vm573
        %v575 = vsel %vm574, %v567, %v571
        %v576 = vand.u32 2147483647, %v566
        %vm577 = vcmp.eq.f32.partialorder %v576, 8.507059e+37
        %v578 = vand.u32 %v566, 2147483648
        %v579 = vor.u32 1.1754944e-38, %v578
        %v580 = vsel %vm577, %v579, %v575
        %v581 = vmul.f32 1.0, %v580
        %v582 = vperm.slane %v581, 0
        %v583 = vlaneseq
        %v584 = vshrl.u32 %v583, 7
        %586 = vset.pattern.permute.xlu0 %v584
        %587 = vperm.xlu0 %586, %v582
        %v588 = vpop.permute.xlu0 %587
        %v589 = vlaneseq
        %v590 = vshrl.u32 %v589, 7
        %v591 = vadd.s32 %v590, 8
        %592 = vset.pattern.permute.xlu0 %v591
        %593 = vperm.xlu0 %592, %v582
        %v594 = vpop.permute.xlu0 %593
        %v595 = vlaneseq
        %v596 = vshrl.u32 %v595, 7
        %v597 = vadd.s32 %v596, 16
        %598 = vset.pattern.permute.xlu0 %v597
        %599 = vperm.xlu0 %598, %v582
        %v600 = vpop.permute.xlu0 %599
        %v601 = vlaneseq
        %v602 = vshrl.u32 %v601, 7
        %v603 = vadd.s32 %v602, 24
        %604 = vset.pattern.permute.xlu0 %v603
        %605 = vperm.xlu0 %604, %v582
        %v606 = vpop.permute.xlu0 %605
        %v607 = vlaneseq
        %v608 = vshrl.u32 %v607, 7
        %v609 = vadd.s32 %v608, 32
        %610 = vset.pattern.permute.xlu0 %v609
        %611 = vperm.xlu0 %610, %v582
        %v612 = vpop.permute.xlu0 %611
        %v613 = vlaneseq
        %v614 = vshrl.u32 %v613, 7
        %v615 = vadd.s32 %v614, 40
        %616 = vset.pattern.permute.xlu0 %v615
        %617 = vperm.xlu0 %616, %v582
        %v618 = vpop.permute.xlu0 %617
        %v619 = vlaneseq
        %v620 = vshrl.u32 %v619, 7
        %v621 = vadd.s32 %v620, 48
        %622 = vset.pattern.permute.xlu0 %v621
        %623 = vperm.xlu0 %622, %v582
        %v624 = vpop.permute.xlu0 %623
        %v625 = vlaneseq
        %v626 = vshrl.u32 %v625, 7
        %v627 = vadd.s32 %v626, 56
        %628 = vset.pattern.permute.xlu0 %v627
        %629 = vperm.xlu0 %628, %v582
        %v630 = vpop.permute.xlu0 %629
        %v631 = vmul.f32 %v191, %v588
        %v632 = vmul.f32 %v192, %v588
        %v633 = vmul.f32 %v193, %v588
        %v634 = vmul.f32 %v194, %v588
        %v635 = vmul.f32 %v195, %v588
        %v636 = vmul.f32 %v196, %v588
        %v637 = vmul.f32 %v197, %v588
        %v638 = vmul.f32 %v198, %v588
        %v639 = vmul.f32 %v199, %v588
        %v640 = vmul.f32 %v200, %v588
        %v641 = vmul.f32 %v201, %v588
        %v642 = vmul.f32 %v202, %v588
        %v643 = vmul.f32 %v203, %v588
        %v644 = vmul.f32 %v204, %v588
        %v645 = vmul.f32 %v205, %v588
        %v646 = vmul.f32 %v206, %v588
        %v647 = vmul.f32 %v207, %v594
        %v648 = vmul.f32 %v208, %v594
        %v649 = vmul.f32 %v209, %v594
        %v650 = vmul.f32 %v210, %v594
        %v651 = vmul.f32 %v211, %v594
        %v652 = vmul.f32 %v212, %v594
        %v653 = vmul.f32 %v213, %v594
        %v654 = vmul.f32 %v214, %v594
        %v655 = vmul.f32 %v215, %v594
        %v656 = vmul.f32 %v216, %v594
        %v657 = vmul.f32 %v217, %v594
        %v658 = vmul.f32 %v218, %v594
        %v659 = vmul.f32 %v219, %v594
        %v660 = vmul.f32 %v220, %v594
        %v661 = vmul.f32 %v221, %v594
        %v662 = vmul.f32 %v222, %v594
        %v663 = vmul.f32 %v223, %v600
        %v664 = vmul.f32 %v224, %v600
        %v665 = vmul.f32 %v225, %v600
        %v666 = vmul.f32 %v226, %v600
        %v667 = vmul.f32 %v227, %v600
        %v668 = vmul.f32 %v228, %v600
        %v669 = vmul.f32 %v229, %v600
        %v670 = vmul.f32 %v230, %v600
        %v671 = vmul.f32 %v231, %v600
        %v672 = vmul.f32 %v232, %v600
        %v673 = vmul.f32 %v233, %v600
        %v674 = vmul.f32 %v234, %v600
        %v675 = vmul.f32 %v235, %v600
        %v676 = vmul.f32 %v236, %v600
        %v677 = vmul.f32 %v237, %v600
        %v678 = vmul.f32 %v238, %v600
        %v679 = vmul.f32 %v239, %v606
        %v680 = vmul.f32 %v240, %v606
        %v681 = vmul.f32 %v241, %v606
        %v682 = vmul.f32 %v242, %v606
        %v683 = vmul.f32 %v243, %v606
        %v684 = vmul.f32 %v244, %v606
        %v685 = vmul.f32 %v245, %v606
        %v686 = vmul.f32 %v246, %v606
        %v687 = vmul.f32 %v247, %v606
        %v688 = vmul.f32 %v248, %v606
        %v689 = vmul.f32 %v249, %v606
        %v690 = vmul.f32 %v250, %v606
        %v691 = vmul.f32 %v251, %v606
        %v692 = vmul.f32 %v252, %v606
        %v693 = vmul.f32 %v253, %v606
        %v694 = vmul.f32 %v254, %v606
        %v695 = vmul.f32 %v255, %v612
        %v696 = vmul.f32 %v256, %v612
        %v697 = vmul.f32 %v257, %v612
        %v698 = vmul.f32 %v258, %v612
        %v699 = vmul.f32 %v259, %v612
        %v700 = vmul.f32 %v260, %v612
        %v701 = vmul.f32 %v261, %v612
        %v702 = vmul.f32 %v262, %v612
        %v703 = vmul.f32 %v263, %v612
        %v704 = vmul.f32 %v264, %v612
        %v705 = vmul.f32 %v265, %v612
        %v706 = vmul.f32 %v266, %v612
        %v707 = vmul.f32 %v267, %v612
        %v708 = vmul.f32 %v268, %v612
        %v709 = vmul.f32 %v269, %v612
        %v710 = vmul.f32 %v270, %v612
        %v711 = vmul.f32 %v271, %v618
        %v712 = vmul.f32 %v272, %v618
        %v713 = vmul.f32 %v273, %v618
        %v714 = vmul.f32 %v274, %v618
        %v715 = vmul.f32 %v275, %v618
        %v716 = vmul.f32 %v276, %v618
        %v717 = vmul.f32 %v277, %v618
        %v718 = vmul.f32 %v278, %v618
        %v719 = vmul.f32 %v279, %v618
        %v720 = vmul.f32 %v280, %v618
        %v721 = vmul.f32 %v281, %v618
        %v722 = vmul.f32 %v282, %v618
        %v723 = vmul.f32 %v283, %v618
        %v724 = vmul.f32 %v284, %v618
        %v725 = vmul.f32 %v285, %v618
        %v726 = vmul.f32 %v286, %v618
        %v727 = vmul.f32 %v287, %v624
        %v728 = vmul.f32 %v288, %v624
        %v729 = vmul.f32 %v289, %v624
        %v730 = vmul.f32 %v290, %v624
        %v731 = vmul.f32 %v291, %v624
        %v732 = vmul.f32 %v292, %v624
        %v733 = vmul.f32 %v293, %v624
        %v734 = vmul.f32 %v294, %v624
        %v735 = vmul.f32 %v295, %v624
        %v736 = vmul.f32 %v296, %v624
        %v737 = vmul.f32 %v297, %v624
        %v738 = vmul.f32 %v298, %v624
        %v739 = vmul.f32 %v299, %v624
        %v740 = vmul.f32 %v300, %v624
        %v741 = vmul.f32 %v301, %v624
        %v742 = vmul.f32 %v302, %v624
        %v743 = vmul.f32 %v303, %v630
        %v744 = vmul.f32 %v304, %v630
        %v745 = vmul.f32 %v305, %v630
        %v746 = vmul.f32 %v306, %v630
        %v747 = vmul.f32 %v307, %v630
        %v748 = vmul.f32 %v308, %v630
        %v749 = vmul.f32 %v309, %v630
        %v750 = vmul.f32 %v310, %v630
        %v751 = vmul.f32 %v311, %v630
        %v752 = vmul.f32 %v312, %v630
        %v753 = vmul.f32 %v313, %v630
        %v754 = vmul.f32 %v314, %v630
        %v755 = vmul.f32 %v315, %v630
        %v756 = vmul.f32 %v316, %v630
        %v757 = vmul.f32 %v317, %v630
        %v758 = vmul.f32 %v318, %v630
        %759 = vst [vmem:[%s190] sm:$0xff] %v631
        %760 = vst [vmem:[%s190 + $0x8] sm:$0xff] %v632
        %761 = vst [vmem:[%s190 + $0x10] sm:$0xff] %v633
        %762 = vst [vmem:[%s190 + $0x18] sm:$0xff] %v634
        %763 = vst [vmem:[%s190 + $0x20] sm:$0xff] %v635
        %764 = vst [vmem:[%s190 + $0x28] sm:$0xff] %v636
        %765 = vst [vmem:[%s190 + $0x30] sm:$0xff] %v637
        %766 = vst [vmem:[%s190 + $0x38] sm:$0xff] %v638
        %767 = vst [vmem:[%s190 + $0x40] sm:$0xff] %v639
        %768 = vst [vmem:[%s190 + $0x48] sm:$0xff] %v640
        %769 = vst [vmem:[%s190 + $0x50] sm:$0xff] %v641
        %770 = vst [vmem:[%s190 + $0x58] sm:$0xff] %v642
        %771 = vst [vmem:[%s190 + $0x60] sm:$0xff] %v643
        %772 = vst [vmem:[%s190 + $0x68] sm:$0xff] %v644
        %773 = vst [vmem:[%s190 + $0x70] sm:$0xff] %v645
        %774 = vst [vmem:[%s190 + $0x78] sm:$0xff] %v646
        %775 = vst [vmem:[%s190 + $0x80] sm:$0xff] %v647
        %776 = vst [vmem:[%s190 + $0x88] sm:$0xff] %v648
        %777 = vst [vmem:[%s190 + $0x90] sm:$0xff] %v649
        %778 = vst [vmem:[%s190 + $0x98] sm:$0xff] %v650
        %779 = vst [vmem:[%s190 + $0xa0] sm:$0xff] %v651
        %780 = vst [vmem:[%s190 + $0xa8] sm:$0xff] %v652
        %781 = vst [vmem:[%s190 + $0xb0] sm:$0xff] %v653
        %782 = vst [vmem:[%s190 + $0xb8] sm:$0xff] %v654
        %783 = vst [vmem:[%s190 + $0xc0] sm:$0xff] %v655
        %784 = vst [vmem:[%s190 + $0xc8] sm:$0xff] %v656
        %785 = vst [vmem:[%s190 + $0xd0] sm:$0xff] %v657
        %786 = vst [vmem:[%s190 + $0xd8] sm:$0xff] %v658
        %787 = vst [vmem:[%s190 + $0xe0] sm:$0xff] %v659
        %788 = vst [vmem:[%s190 + $0xe8] sm:$0xff] %v660
        %789 = vst [vmem:[%s190 + $0xf0] sm:$0xff] %v661
        %790 = vst [vmem:[%s190 + $0xf8] sm:$0xff] %v662
        %791 = vst [vmem:[%s190 + $0x100] sm:$0xff] %v663
        %792 = vst [vmem:[%s190 + $0x108] sm:$0xff] %v664
        %793 = vst [vmem:[%s190 + $0x110] sm:$0xff] %v665
        %794 = vst [vmem:[%s190 + $0x118] sm:$0xff] %v666
        %795 = vst [vmem:[%s190 + $0x120] sm:$0xff] %v667
        %796 = vst [vmem:[%s190 + $0x128] sm:$0xff] %v668
        %797 = vst [vmem:[%s190 + $0x130] sm:$0xff] %v669
        %798 = vst [vmem:[%s190 + $0x138] sm:$0xff] %v670
        %799 = vst [vmem:[%s190 + $0x140] sm:$0xff] %v671
        %800 = vst [vmem:[%s190 + $0x148] sm:$0xff] %v672
        %801 = vst [vmem:[%s190 + $0x150] sm:$0xff] %v673
        %802 = vst [vmem:[%s190 + $0x158] sm:$0xff] %v674
        %803 = vst [vmem:[%s190 + $0x160] sm:$0xff] %v675
        %804 = vst [vmem:[%s190 + $0x168] sm:$0xff] %v676
        %805 = vst [vmem:[%s190 + $0x170] sm:$0xff] %v677
        %806 = vst [vmem:[%s190 + $0x178] sm:$0xff] %v678
        %807 = vst [vmem:[%s190 + $0x180] sm:$0xff] %v679
        %808 = vst [vmem:[%s190 + $0x188] sm:$0xff] %v680
        %809 = vst [vmem:[%s190 + $0x190] sm:$0xff] %v681
        %810 = vst [vmem:[%s190 + $0x198] sm:$0xff] %v682
        %811 = vst [vmem:[%s190 + $0x1a0] sm:$0xff] %v683
        %812 = vst [vmem:[%s190 + $0x1a8] sm:$0xff] %v684
        %813 = vst [vmem:[%s190 + $0x1b0] sm:$0xff] %v685
        %814 = vst [vmem:[%s190 + $0x1b8] sm:$0xff] %v686
        %815 = vst [vmem:[%s190 + $0x1c0] sm:$0xff] %v687
        %816 = vst [vmem:[%s190 + $0x1c8] sm:$0xff] %v688
        %817 = vst [vmem:[%s190 + $0x1d0] sm:$0xff] %v689
        %818 = vst [vmem:[%s190 + $0x1d8] sm:$0xff] %v690
        %819 = vst [vmem:[%s190 + $0x1e0] sm:$0xff] %v691
        %820 = vst [vmem:[%s190 + $0x1e8] sm:$0xff] %v692
        %821 = vst [vmem:[%s190 + $0x1f0] sm:$0xff] %v693
        %822 = vst [vmem:[%s190 + $0x1f8] sm:$0xff] %v694
        %823 = vst [vmem:[%s190 + $0x200] sm:$0xff] %v695
        %824 = vst [vmem:[%s190 + $0x208] sm:$0xff] %v696
        %825 = vst [vmem:[%s190 + $0x210] sm:$0xff] %v697
        %826 = vst [vmem:[%s190 + $0x218] sm:$0xff] %v698
        %827 = vst [vmem:[%s190 + $0x220] sm:$0xff] %v699
        %828 = vst [vmem:[%s190 + $0x228] sm:$0xff] %v700
        %829 = vst [vmem:[%s190 + $0x230] sm:$0xff] %v701
        %830 = vst [vmem:[%s190 + $0x238] sm:$0xff] %v702
        %831 = vst [vmem:[%s190 + $0x240] sm:$0xff] %v703
        %832 = vst [vmem:[%s190 + $0x248] sm:$0xff] %v704
        %833 = vst [vmem:[%s190 + $0x250] sm:$0xff] %v705
        %834 = vst [vmem:[%s190 + $0x258] sm:$0xff] %v706
        %835 = vst [vmem:[%s190 + $0x260] sm:$0xff] %v707
        %836 = vst [vmem:[%s190 + $0x268] sm:$0xff] %v708
        %837 = vst [vmem:[%s190 + $0x270] sm:$0xff] %v709
        %838 = vst [vmem:[%s190 + $0x278] sm:$0xff] %v710
        %839 = vst [vmem:[%s190 + $0x280] sm:$0xff] %v711
        %840 = vst [vmem:[%s190 + $0x288] sm:$0xff] %v712
        %841 = vst [vmem:[%s190 + $0x290] sm:$0xff] %v713
        %842 = vst [vmem:[%s190 + $0x298] sm:$0xff] %v714
        %843 = vst [vmem:[%s190 + $0x2a0] sm:$0xff] %v715
        %844 = vst [vmem:[%s190 + $0x2a8] sm:$0xff] %v716
        %845 = vst [vmem:[%s190 + $0x2b0] sm:$0xff] %v717
        %846 = vst [vmem:[%s190 + $0x2b8] sm:$0xff] %v718
        %847 = vst [vmem:[%s190 + $0x2c0] sm:$0xff] %v719
        %848 = vst [vmem:[%s190 + $0x2c8] sm:$0xff] %v720
        %849 = vst [vmem:[%s190 + $0x2d0] sm:$0xff] %v721
        %850 = vst [vmem:[%s190 + $0x2d8] sm:$0xff] %v722
        %851 = vst [vmem:[%s190 + $0x2e0] sm:$0xff] %v723
        %852 = vst [vmem:[%s190 + $0x2e8] sm:$0xff] %v724
        %853 = vst [vmem:[%s190 + $0x2f0] sm:$0xff] %v725
        %854 = vst [vmem:[%s190 + $0x2f8] sm:$0xff] %v726
        %855 = vst [vmem:[%s190 + $0x300] sm:$0xff] %v727
        %856 = vst [vmem:[%s190 + $0x308] sm:$0xff] %v728
        %857 = vst [vmem:[%s190 + $0x310] sm:$0xff] %v729
        %858 = vst [vmem:[%s190 + $0x318] sm:$0xff] %v730
        %859 = vst [vmem:[%s190 + $0x320] sm:$0xff] %v731
        %860 = vst [vmem:[%s190 + $0x328] sm:$0xff] %v732
        %861 = vst [vmem:[%s190 + $0x330] sm:$0xff] %v733
        %862 = vst [vmem:[%s190 + $0x338] sm:$0xff] %v734
        %863 = vst [vmem:[%s190 + $0x340] sm:$0xff] %v735
        %864 = vst [vmem:[%s190 + $0x348] sm:$0xff] %v736
        %865 = vst [vmem:[%s190 + $0x350] sm:$0xff] %v737
        %866 = vst [vmem:[%s190 + $0x358] sm:$0xff] %v738
        %867 = vst [vmem:[%s190 + $0x360] sm:$0xff] %v739
        %868 = vst [vmem:[%s190 + $0x368] sm:$0xff] %v740
        %869 = vst [vmem:[%s190 + $0x370] sm:$0xff] %v741
        %870 = vst [vmem:[%s190 + $0x378] sm:$0xff] %v742
        %871 = vst [vmem:[%s190 + $0x380] sm:$0xff] %v743
        %872 = vst [vmem:[%s190 + $0x388] sm:$0xff] %v744
        %873 = vst [vmem:[%s190 + $0x390] sm:$0xff] %v745
        %874 = vst [vmem:[%s190 + $0x398] sm:$0xff] %v746
        %875 = vst [vmem:[%s190 + $0x3a0] sm:$0xff] %v747
        %876 = vst [vmem:[%s190 + $0x3a8] sm:$0xff] %v748
        %877 = vst [vmem:[%s190 + $0x3b0] sm:$0xff] %v749
        %878 = vst [vmem:[%s190 + $0x3b8] sm:$0xff] %v750
        %879 = vst [vmem:[%s190 + $0x3c0] sm:$0xff] %v751
        %880 = vst [vmem:[%s190 + $0x3c8] sm:$0xff] %v752
        %881 = vst [vmem:[%s190 + $0x3d0] sm:$0xff] %v753
        %882 = vst [vmem:[%s190 + $0x3d8] sm:$0xff] %v754
        %883 = vst [vmem:[%s190 + $0x3e0] sm:$0xff] %v755
        %884 = vst [vmem:[%s190 + $0x3e8] sm:$0xff] %v756
        %885 = vst [vmem:[%s190 + $0x3f0] sm:$0xff] %v757
        %886 = vst [vmem:[%s190 + $0x3f8] sm:$0xff] %v758
        %s887 = sand.u32 %s96, 1
        %s888 = scalar_lea.sflag [#allocation4], %s887
        %s889 = sand.u32 %s96, 1
        %s890 = smul.addr %s889, 1024
        %s891 = scalar_lea.vmem [#allocation5], %s890
        // Predicated region
        $region37: #{se_block.1} parent=31 // pred_check
          %p892 = pneg %p106
        $region38: #{se_block.1} parent=31 // pred_check_branch
          %894 = sbr.rel (%p892) target = $region40
        $region39: #{se_block.1} parent=31 // pred_region
          %896 = vsyncadd %s888, 0
          %s897 = smul.addr %s20, 128
          %s898 = smul.addr %s897, 8
          %s899 = scalar_lea.hbm %s3, %s898
          %s900 = sshll.u32 %s891, 4
          %s901 = int_to_ptr.vmem [resolvable:$true] %s900
          %s902 = sshll.u32 %s899, 4
          %s903 = int_to_ptr.hbm [resolvable:$true] %s902
          %908 = dma.vmem_to_hbm [thread:$0]  %s901, 16384, %s903, %s888, 2048, 2048, 128
        $region40: #{se_block.1} parent=31 // pred_fallthru
          _
      $region32: #{se_block.1} parent=5 // pred_fallthru
        _
      %p909 = scmp.le.s32.totalorder 2, %s15
      // Predicated region
      $region41: #{se_block.1} parent=5 // pred_check
        %p910 = pneg %p909
      $region42: #{se_block.1} parent=5 // pred_check_branch
        %912 = sbr.rel (%p910) target = $region44
      $region43: #{se_block.1} parent=5 // pred_region
        %s913 = ssub.s32 %s15, 2
        // Predicated region
        $region45: #{se_block.1} parent=43 // pred_check
          %p914 = pneg %p112
        $region46: #{se_block.1} parent=43 // pred_check_branch
          %916 = sbr.rel (%p914) target = $region48
        $region47: #{se_block.1} parent=43 // pred_region
          %s917 = sand.u32 %s97, 1
          %s918 = scalar_lea.sflag [#allocation4], %s917
          %s919 = sand.u32 %s97, 1
          %s920 = smul.addr %s919, 1024
          %s921 = scalar_lea.vmem [#allocation5], %s920
          %923 = dma.done %s918, 16384
        $region48: #{se_block.1} parent=43 // pred_fallthru
          _
      $region44: #{se_block.1} parent=5 // pred_fallthru
        _
    $region6: #{se_block.1} parent=1 // loop_footer
      %s19 = sadd.s32 1, %s15
    $region7: #{se_block.1} parent=1 // loop_footer_branch
      %14 = sbr.rel target = $region3
    $region8: #{se_block.1} parent=1 // loop_exit
      _
    %924 = vsyncpa [#allocation3], 1
    %s925 = scalar_lea.sflag [#allocation3], 1
    %926 = vsyncpa %s925, 1
    %927 = vsyncpa [#allocation4], 1
    %s928 = scalar_lea.sflag [#allocation4], 1
    %929 = vsyncpa %s928, 1

</llo_original>
